<compile_context>
chip_gen: v7x
topology: tpu7x:2x2x1
jax: 0.10.0
libtpu: 0.0.40
codegen_flags: <defaults>
</compile_context>

<pallas_src>
import numpy as np
import jax
import jax.numpy as jnp
from jax import lax
from jax.experimental import pallas as pl
from jax.experimental.pallas import tpu as pltpu

# ----- model hyper-parameters (module-level values from the reference file) -----
FILTER_SIZES = [2, 3, 4]
NUM_FILTERS = [2, 2, 2]
NUM_CLASSES = 2
VOCAB_SIZE = 32
EMBED_DIM = 32
BATCH = 2
SEQ_LEN = 8

FS_MAX = max(FILTER_SIZES)          # 4
K_PACK = FS_MAX * EMBED_DIM         # 128 : im2col contraction depth (full MXU K)
F_PAD = 128                         # lane-dense feature / logit width
F_TOTAL = sum(NUM_FILTERS)          # 6
MAX_NORM = 5.0
NEG_INF = -1e30                     # pool-mask sentinel (representable in f32/bf16)

TB = 8                              # sentences per grid step (output sublane-aligned)
PAD_ROWS = 8                        # scratch pad rows (>= FS_MAX-1, multiple of 8)
MXU_DTYPE = jnp.bfloat16            # MXU operand dtype (f32 accumulate); elementwise stays f32


def _cnn_nlp_kernel(ids_ref,        # SMEM (B_PAD*L,) int32 — scalar-prefetched token ids
                    emb_hbm,        # HBM  (V, E) f32 embedding table (manual DMA gather)
                    wconv_ref,      # VMEM (K_PACK, F_PAD) bf16 packed conv taps (resident)
                    bconv_ref,      # VMEM (1, F_PAD) f32 packed conv bias
                    wfc_ref,        # VMEM (F_PAD, F_PAD) bf16 packed fc weight (resident)
                    bfc_ref,        # VMEM (1, F_PAD) f32 packed fc bias
                    pmask_ref,      # VMEM (TB*L, F_PAD) f32 additive pool mask (0 / -1e30)
                    out_ref,        # VMEM (TB, F_PAD) f32 logits tile
                    x_ref,          # VMEM (TB*L + PAD_ROWS, E) f32 gathered embeddings
                    patch_ref,      # VMEM (TB*L, K_PACK) f32 im2col slab
                    dma_sem):       # DMA semaphore array (1,)
    L = SEQ_LEN
    E = EMBED_DIM
    M = TB * L
    base = pl.program_id(0) * M

    # ---- embedding lookup: per-row DMA gather HBM -> VMEM driven by SMEM ids ----
    def _issue(r, carry):
        row = ids_ref[base + r]
        pltpu.make_async_copy(emb_hbm.at[pl.ds(row, 1)],
                              x_ref.at[pl.ds(r, 1)],
                              dma_sem.at[0]).start()
        return carry
    lax.fori_loop(0, M, _issue, 0)

    # zero the trailing pad rows while the gather DMAs are in flight (they only ever feed
    # time positions that the pool mask removes, but keep them deterministic)
    x_ref[M:, :] = jnp.zeros((PAD_ROWS, E), jnp.float32)

    def _wait(r, carry):
        pltpu.make_async_copy(emb_hbm.at[pl.ds(0, 1)],
                              x_ref.at[pl.ds(r, 1)],
                              dma_sem.at[0]).wait()
        return carry
    lax.fori_loop(0, M, _wait, 0)

    # ---- nn.Embedding(max_norm=5.0): renorm looked-up rows whose L2 norm exceeds 5 ----
    # TODO(synk): PyTorch also mutates the embedding weight in place; forward output matches.
    x = x_ref[0:M, :]
    sumsq = jnp.sum(x * x, axis=-1, keepdims=True)
    scale = jnp.minimum(1.0, MAX_NORM * lax.rsqrt(sumsq + 1e-14))   # EUP rsqrt, single mul
    x_ref[0:M, :] = x * scale

    # ---- im2col: write each tap's sublane-shifted slice into the 128-wide scratch slab ----
    # Shifts that cross a sentence boundary (or hit the pad rows) only reach time positions
    # masked by pmask, so the flat per-tile shift is safe.
    for k in range(FS_MAX):                                         # static 4-tap loop
        patch_ref[:, k * E:(k + 1) * E] = x_ref[k:k + M, :]

    # ---- all conv branches as one K=128 matmul (bf16 operands, f32 accumulate) ----
    conv = jnp.dot(patch_ref[...].astype(MXU_DTYPE), wconv_ref[...],
                   preferred_element_type=jnp.float32)              # (M, F_PAD)
    conv = jnp.maximum(conv + bconv_ref[...], 0.0)                  # bias + ReLU (f32 VPU)

    # ---- per-branch max-pool over time (precomputed additive -1e30 mask, no iota/select) ----
    pooled = jnp.max((conv + pmask_ref[...]).reshape(TB, L, F_PAD), axis=1)   # (TB, F_PAD)

    # ---- dropout(p=0.5) is identity at inference; fc as a lane-dense matmul ----
    # TODO(synk): training-mode dropout RNG not emitted.
    logits = jnp.dot(pooled.astype(MXU_DTYPE), wfc_ref[...],
                     preferred_element_type=jnp.float32) + bfc_ref[...]
    out_ref[...] = logits                                           # full (TB, 128) unmasked store


def _pool_mask_const():
    """(TB*L, F_PAD) additive mask: 0 at valid conv time positions, -1e30 elsewhere."""
    m = np.zeros((SEQ_LEN, F_PAD), np.float32)
    off = 0
    for fs, nf in zip(FILTER_SIZES, NUM_FILTERS):
        m[SEQ_LEN - fs + 1:, off:off + nf] = NEG_INF
        off += nf
    return jnp.asarray(np.tile(m, (TB, 1)))


def pack_params(params):
    """Pack torch-layout conv/fc weights into lane-dense, MXU-friendly bf16 slabs (done once)."""
    w_packed = jnp.zeros((K_PACK, F_PAD), jnp.float32)
    b_packed = jnp.zeros((1, F_PAD), jnp.float32)
    off = 0
    for i, (fs, nf) in enumerate(zip(FILTER_SIZES, NUM_FILTERS)):
        w = params[f"conv_w{i}"].astype(jnp.float32)                 # (nf, E, fs) torch Conv1d
        for k in range(fs):
            # tap k of branch i -> rows [k*E:(k+1)*E], cols [off:off+nf]
            w_packed = w_packed.at[k * EMBED_DIM:(k + 1) * EMBED_DIM, off:off + nf].set(w[:, :, k].T)
        b_packed = b_packed.at[0, off:off + nf].set(params[f"conv_b{i}"].astype(jnp.float32))
        off += nf
    wfc_packed = jnp.zeros((F_PAD, F_PAD), jnp.float32)
    wfc_packed = wfc_packed.at[:off, :NUM_CLASSES].set(params["fc_w"].astype(jnp.float32).T)
    bfc_packed = jnp.zeros((1, F_PAD), jnp.float32)
    bfc_packed = bfc_packed.at[0, :NUM_CLASSES].set(params["fc_b"].astype(jnp.float32))
    return (w_packed.astype(MXU_DTYPE), b_packed,
            wfc_packed.astype(MXU_DTYPE), bfc_packed)


def cnn_nlp_forward(input_ids, params):
    """Whole forward pass in one pallas_call; only packing / padding / output slice in JAX."""
    B, L = input_ids.shape
    assert L == SEQ_LEN
    b_pad = ((B + TB - 1) // TB) * TB                     # pad batch to a sublane-aligned tile
    ids = jnp.zeros((b_pad, L), jnp.int32).at[:B, :].set(input_ids.astype(jnp.int32))
    ids_flat = ids.reshape(b_pad * L)

    emb = params["embedding"].astype(jnp.float32)
    wconv, bconv, wfc, bfc = pack_params(params)
    pmask = _pool_mask_const()

    n_tiles = b_pad // TB
    m_total = b_pad * L

    cost = pl.CostEstimate(
        flops=2 * m_total * K_PACK * F_PAD + 2 * b_pad * F_PAD * F_PAD,
        transcendentals=m_total,
        bytes_accessed=(ids_flat.size * 4 + m_total * EMBED_DIM * 4
                        + wconv.size * 2 + wfc.size * 2
                        + (bconv.size + bfc.size + pmask.size) * 4
                        + b_pad * F_PAD * 4),
    )

    grid_spec = pltpu.PrefetchScalarGridSpec(
        num_scalar_prefetch=1,                            # ids -> SMEM, drives the DMA gather
        grid=(n_tiles,),                                  # batch-tile axis (grows with B)
        in_specs=[
            pl.BlockSpec(memory_space=pl.ANY),                            # embedding table (HBM)
            pl.BlockSpec((K_PACK, F_PAD), lambda i, ids: (0, 0)),         # resident conv weight
            pl.BlockSpec((1, F_PAD), lambda i, ids: (0, 0)),              # resident conv bias
            pl.BlockSpec((F_PAD, F_PAD), lambda i, ids: (0, 0)),          # resident fc weight
            pl.BlockSpec((1, F_PAD), lambda i, ids: (0, 0)),              # resident fc bias
            pl.BlockSpec((TB * SEQ_LEN, F_PAD), lambda i, ids: (0, 0)),   # resident pool mask
        ],
        out_specs=pl.BlockSpec((TB, F_PAD), lambda i, ids: (i, 0)),
        scratch_shapes=[
            pltpu.VMEM((TB * SEQ_LEN + PAD_ROWS, EMBED_DIM), jnp.float32),  # gathered embeddings
            pltpu.VMEM((TB * SEQ_LEN, K_PACK), jnp.float32),                # im2col slab
            pltpu.SemaphoreType.DMA((1,)),
        ],
    )

    out = pl.pallas_call(
        _cnn_nlp_kernel,
        grid_spec=grid_spec,
        out_shape=jax.ShapeDtypeStruct((b_pad, F_PAD), jnp.float32),
        compiler_params=pltpu.CompilerParams(
            dimension_semantics=("parallel",),            # batch tiles -> both TCs on v7x
            vmem_limit_bytes=32 * 1024 * 1024,            # explicit; fits v5e/v6e/v7x
        ),
        cost_estimate=cost,
    )(ids_flat, emb, wconv, bconv, wfc, bfc, pmask)
    return out[:B, :NUM_CLASSES]


def init_params(key):
    """Deterministic synthetic parameters matching the module's shapes."""
    keys = jax.random.split(key, 2 + 2 * len(FILTER_SIZES) + 2)
    params = {}
    emb = 0.1 * jax.random.normal(keys[0], (VOCAB_SIZE, EMBED_DIM), jnp.float32)
    emb = emb.at[0].set(0.0)                              # padding_idx=0
    params["embedding"] = emb
    for i, (fs, nf) in enumerate(zip(FILTER_SIZES, NUM_FILTERS)):
        params[f"conv_w{i}"] = 0.1 * jax.random.normal(
            keys[1 + 2 * i], (nf, EMBED_DIM, fs), jnp.float32)   # torch Conv1d weight layout
        params[f"conv_b{i}"] = 0.1 * jax.random.normal(
            keys[2 + 2 * i], (nf,), jnp.float32)
    params["fc_w"] = 0.1 * jax.random.normal(keys[-2], (NUM_CLASSES, F_TOTAL), jnp.float32)
    params["fc_b"] = 0.1 * jax.random.normal(keys[-1], (NUM_CLASSES,), jnp.float32)
    return params


if __name__ == "__main__":
    key = jax.random.PRNGKey(0)
    pkey, ikey = jax.random.split(key)
    params = init_params(pkey)
    input_ids = jax.random.randint(ikey, (BATCH, SEQ_LEN), 0, VOCAB_SIZE, dtype=jnp.int32)

    logits = cnn_nlp_forward(input_ids, params)
    jax.block_until_ready(logits)
    assert logits.shape == (BATCH, NUM_CLASSES)
    assert logits.dtype == jnp.float32
    assert bool(jnp.all(jnp.isfinite(logits)))
    print("KERNEL_OK")
</pallas_src>

<mosaic_0001>
module attributes {stable_mosaic.version = 11 : i64} {
  func.func @_cnn_nlp_kernel(%arg0: i32, %arg1: memref<64xi32, #tpu.memory_space<smem>>, %arg2: memref<32x32xf32, #tpu.memory_space<any>>, %arg3: memref<128x128xbf16, #tpu.memory_space<vmem>>, %arg4: memref<1x128xf32, #tpu.memory_space<vmem>>, %arg5: memref<128x128xbf16, #tpu.memory_space<vmem>>, %arg6: memref<1x128xf32, #tpu.memory_space<vmem>>, %arg7: memref<64x128xf32, #tpu.memory_space<vmem>>, %arg8: memref<8x128xf32, #tpu.memory_space<vmem>>, %arg9: memref<72x32xf32, #tpu.memory_space<vmem>>, %arg10: memref<64x128xf32, #tpu.memory_space<vmem>>, %arg11: memref<1x!tpu.dma_semaphore, #tpu.memory_space<semaphore_mem>>) attributes {dimension_semantics = [#tpu.dimension_semantics<parallel>], iteration_bounds = array<i64: 1>, scalar_prefetch = 1 : i64, scratch_operands = 3 : i64, tpu.core_type = #tpu.core_type<tc>, window_params = [{}, {pipeline_mode = #tpu.pipeline_mode<synchronous>, transform_indices = @transform_1, window_bounds = array<i64: 128, 128>}, {pipeline_mode = #tpu.pipeline_mode<synchronous>, transform_indices = @transform_2, window_bounds = array<i64: 1, 128>}, {pipeline_mode = #tpu.pipeline_mode<synchronous>, transform_indices = @transform_3, window_bounds = array<i64: 128, 128>}, {pipeline_mode = #tpu.pipeline_mode<synchronous>, transform_indices = @transform_4, window_bounds = array<i64: 1, 128>}, {pipeline_mode = #tpu.pipeline_mode<synchronous>, transform_indices = @transform_5, window_bounds = array<i64: 64, 128>}, {transform_indices = @transform_6, window_bounds = array<i64: 8, 128>}]} {
    %c64_i32 = arith.constant 64 : i32
    %0 = arith.muli %arg0, %c64_i32 : i32
    %c0_i32 = arith.constant 0 : i32
    %c64_i32_0 = arith.constant 64 : i32
    %1 = arith.addi %c0_i32, %c64_i32_0 : i32
    %c1_i32 = arith.constant 1 : i32
    scf.for %arg12 = %c0_i32 to %1 step %c1_i32  : i32 {
      %47 = arith.addi %0, %arg12 : i32
      %48 = arith.index_cast %47 : i32 to index
      %49 = memref.load %arg1[%48] : memref<64xi32, #tpu.memory_space<smem>>
      %c0_i32_43 = arith.constant 0 : i32
      %c0_i32_44 = arith.constant 0 : i32
      %50 = tpu.memref_slice %arg2[%49, %c0_i32_44] : memref<32x32xf32, #tpu.memory_space<any>> -> memref<1x32xf32, #tpu.memory_space<any>>
      %c0_i32_45 = arith.constant 0 : i32
      %51 = tpu.memref_slice %arg9[%arg12, %c0_i32_45] : memref<72x32xf32, #tpu.memory_space<vmem>> -> memref<1x32xf32, #tpu.memory_space<vmem>>
      %52 = tpu.memref_slice %arg11[%c0_i32_43] : memref<1x!tpu.dma_semaphore, #tpu.memory_space<semaphore_mem>> -> memref<1x!tpu.dma_semaphore, #tpu.memory_space<semaphore_mem>>
      %53 = tpu.memref_squeeze %52 : memref<1x!tpu.dma_semaphore, #tpu.memory_space<semaphore_mem>> -> memref<!tpu.dma_semaphore, #tpu.memory_space<semaphore_mem>>
      tpu.enqueue_dma source(%50 : memref<1x32xf32, #tpu.memory_space<any>>) target(%51 : memref<1x32xf32, #tpu.memory_space<vmem>>) target_semaphore(%53 : memref<!tpu.dma_semaphore, #tpu.memory_space<semaphore_mem>>)
    }
    %c64_i32_1 = arith.constant 64 : i32
    %cst = arith.constant 0.000000e+00 : f32
    %2 = vector.broadcast %cst : f32 to vector<8x32xf32>
    %c64 = arith.constant 64 : index
    %c0 = arith.constant 0 : index
    %3 = vector.load %arg9[%c64, %c0] : memref<72x32xf32, #tpu.memory_space<vmem>>, vector<8x32xf32>
    tpu.vector_store %arg9[%c64, %c0], %2 {strides = array<i32>} : memref<72x32xf32, #tpu.memory_space<vmem>>, vector<8x32xf32>,
    %c0_i32_2 = arith.constant 0 : i32
    %c64_i32_3 = arith.constant 64 : i32
    %4 = arith.addi %c0_i32_2, %c64_i32_3 : i32
    %c1_i32_4 = arith.constant 1 : i32
    scf.for %arg12 = %c0_i32_2 to %4 step %c1_i32_4  : i32 {
      %c0_i32_43 = arith.constant 0 : i32
      %c0_i32_44 = arith.constant 0 : i32
      %c0_i32_45 = arith.constant 0 : i32
      %47 = tpu.memref_slice %arg2[%c0_i32_44, %c0_i32_45] : memref<32x32xf32, #tpu.memory_space<any>> -> memref<1x32xf32, #tpu.memory_space<any>>
      %c0_i32_46 = arith.constant 0 : i32
      %48 = tpu.memref_slice %arg9[%arg12, %c0_i32_46] : memref<72x32xf32, #tpu.memory_space<vmem>> -> memref<1x32xf32, #tpu.memory_space<vmem>>
      %49 = tpu.memref_slice %arg11[%c0_i32_43] : memref<1x!tpu.dma_semaphore, #tpu.memory_space<semaphore_mem>> -> memref<1x!tpu.dma_semaphore, #tpu.memory_space<semaphore_mem>>
      %50 = tpu.memref_squeeze %49 : memref<1x!tpu.dma_semaphore, #tpu.memory_space<semaphore_mem>> -> memref<!tpu.dma_semaphore, #tpu.memory_space<semaphore_mem>>
      tpu.wait_dma2 semaphore(%50 : memref<!tpu.dma_semaphore, #tpu.memory_space<semaphore_mem>>) src(%47 : memref<1x32xf32, #tpu.memory_space<any>>) dst(%48 : memref<1x32xf32, #tpu.memory_space<vmem>>)
    }
    %c64_i32_5 = arith.constant 64 : i32
    %c0_6 = arith.constant 0 : index
    %c0_7 = arith.constant 0 : index
    %5 = vector.load %arg9[%c0_6, %c0_7] : memref<72x32xf32, #tpu.memory_space<vmem>>, vector<64x32xf32>
    %6 = arith.mulf %5, %5 : vector<64x32xf32>
    %cst_8 = arith.constant dense<0.000000e+00> : vector<64xf32>
    %7 = vector.multi_reduction <add>, %6, %cst_8 [1] : vector<64x32xf32> to vector<64xf32>
    %8 = vector.shape_cast %7 : vector<64xf32> to vector<64x1xf32>
    %cst_9 = arith.constant 9.99999982E-15 : f32
    %9 = vector.broadcast %cst_9 : f32 to vector<64x1xf32>
    %10 = arith.addf %8, %9 : vector<64x1xf32>
    %11 = math.rsqrt %10 : vector<64x1xf32>
    %cst_10 = arith.constant 5.000000e+00 : f32
    %12 = vector.broadcast %cst_10 : f32 to vector<64x1xf32>
    %13 = arith.mulf %12, %11 : vector<64x1xf32>
    %cst_11 = arith.constant 1.000000e+00 : f32
    %14 = vector.broadcast %cst_11 : f32 to vector<64x1xf32>
    %15 = arith.minimumf %14, %13 : vector<64x1xf32>
    %16 = vector.broadcast %15 : vector<64x1xf32> to vector<64x32xf32>
    %17 = arith.mulf %5, %16 : vector<64x32xf32>
    %c0_12 = arith.constant 0 : index
    %c0_13 = arith.constant 0 : index
    %18 = vector.load %arg9[%c0_12, %c0_13] : memref<72x32xf32, #tpu.memory_space<vmem>>, vector<64x32xf32>
    tpu.vector_store %arg9[%c0_12, %c0_13], %17 {strides = array<i32>} : memref<72x32xf32, #tpu.memory_space<vmem>>, vector<64x32xf32>,
    %c0_14 = arith.constant 0 : index
    %c0_15 = arith.constant 0 : index
    %19 = vector.load %arg9[%c0_14, %c0_15] : memref<72x32xf32, #tpu.memory_space<vmem>>, vector<64x32xf32>
    %c0_16 = arith.constant 0 : index
    %c0_17 = arith.constant 0 : index
    %20 = vector.load %arg10[%c0_16, %c0_17] : memref<64x128xf32, #tpu.memory_space<vmem>>, vector<64x32xf32>
    tpu.vector_store %arg10[%c0_16, %c0_17], %19 {strides = array<i32>} : memref<64x128xf32, #tpu.memory_space<vmem>>, vector<64x32xf32>,
    %c1 = arith.constant 1 : index
    %c0_18 = arith.constant 0 : index
    %21 = vector.load %arg9[%c1, %c0_18] : memref<72x32xf32, #tpu.memory_space<vmem>>, vector<64x32xf32>
    %c0_19 = arith.constant 0 : index
    %c32 = arith.constant 32 : index
    %22 = vector.load %arg10[%c0_19, %c32] : memref<64x128xf32, #tpu.memory_space<vmem>>, vector<64x32xf32>
    tpu.vector_store %arg10[%c0_19, %c32], %21 {strides = array<i32>} : memref<64x128xf32, #tpu.memory_space<vmem>>, vector<64x32xf32>,
    %c2 = arith.constant 2 : index
    %c0_20 = arith.constant 0 : index
    %23 = vector.load %arg9[%c2, %c0_20] : memref<72x32xf32, #tpu.memory_space<vmem>>, vector<64x32xf32>
    %c0_21 = arith.constant 0 : index
    %c64_22 = arith.constant 64 : index
    %24 = vector.load %arg10[%c0_21, %c64_22] : memref<64x128xf32, #tpu.memory_space<vmem>>, vector<64x32xf32>
    tpu.vector_store %arg10[%c0_21, %c64_22], %23 {strides = array<i32>} : memref<64x128xf32, #tpu.memory_space<vmem>>, vector<64x32xf32>,
    %c3 = arith.constant 3 : index
    %c0_23 = arith.constant 0 : index
    %25 = vector.load %arg9[%c3, %c0_23] : memref<72x32xf32, #tpu.memory_space<vmem>>, vector<64x32xf32>
    %c0_24 = arith.constant 0 : index
    %c96 = arith.constant 96 : index
    %26 = vector.load %arg10[%c0_24, %c96] : memref<64x128xf32, #tpu.memory_space<vmem>>, vector<64x32xf32>
    tpu.vector_store %arg10[%c0_24, %c96], %25 {strides = array<i32>} : memref<64x128xf32, #tpu.memory_space<vmem>>, vector<64x32xf32>,
    %c0_25 = arith.constant 0 : index
    %c0_26 = arith.constant 0 : index
    %27 = vector.load %arg10[%c0_25, %c0_26] : memref<64x128xf32, #tpu.memory_space<vmem>>, vector<64x128xf32>
    %28 = arith.truncf %27 : vector<64x128xf32> to vector<64x128xbf16>
    %c0_27 = arith.constant 0 : index
    %c0_28 = arith.constant 0 : index
    %29 = vector.load %arg3[%c0_27, %c0_28] : memref<128x128xbf16, #tpu.memory_space<vmem>>, vector<128x128xbf16>
    %cst_29 = arith.constant dense<0.000000e+00> : vector<64x128xf32>
    %30 = tpu.matmul %28, %29, %cst_29 {dimension_numbers = #tpu.dot_dimension_numbers<[1], [0], [0], [1], [0, 0, 1, 1], [], []>} : vector<64x128xbf16>, vector<128x128xbf16>, vector<64x128xf32> -> vector<64x128xf32>
    %c0_30 = arith.constant 0 : index
    %c0_31 = arith.constant 0 : index
    %31 = vector.load %arg4[%c0_30, %c0_31] : memref<1x128xf32, #tpu.memory_space<vmem>>, vector<1x128xf32>
    %32 = vector.broadcast %31 : vector<1x128xf32> to vector<64x128xf32>
    %33 = arith.addf %30, %32 : vector<64x128xf32>
    %cst_32 = arith.constant 0.000000e+00 : f32
    %34 = vector.broadcast %cst_32 : f32 to vector<64x128xf32>
    %35 = arith.maximumf %33, %34 : vector<64x128xf32>
    %c0_33 = arith.constant 0 : index
    %c0_34 = arith.constant 0 : index
    %36 = vector.load %arg7[%c0_33, %c0_34] : memref<64x128xf32, #tpu.memory_space<vmem>>, vector<64x128xf32>
    %37 = arith.addf %35, %36 : vector<64x128xf32>
    %38 = vector.shape_cast %37 : vector<64x128xf32> to vector<8x8x128xf32>
    %cst_35 = arith.constant dense<0xFF800000> : vector<8x128xf32>
    %39 = vector.multi_reduction <maximumf>, %38, %cst_35 [1] : vector<8x8x128xf32> to vector<8x128xf32>
    %40 = arith.truncf %39 : vector<8x128xf32> to vector<8x128xbf16>
    %c0_36 = arith.constant 0 : index
    %c0_37 = arith.constant 0 : index
    %41 = vector.load %arg5[%c0_36, %c0_37] : memref<128x128xbf16, #tpu.memory_space<vmem>>, vector<128x128xbf16>
    %cst_38 = arith.constant dense<0.000000e+00> : vector<8x128xf32>
    %42 = tpu.matmul %40, %41, %cst_38 {dimension_numbers = #tpu.dot_dimension_numbers<[1], [0], [0], [1], [0, 0, 1, 1], [], []>} : vector<8x128xbf16>, vector<128x128xbf16>, vector<8x128xf32> -> vector<8x128xf32>
    %c0_39 = arith.constant 0 : index
    %c0_40 = arith.constant 0 : index
    %43 = vector.load %arg6[%c0_39, %c0_40] : memref<1x128xf32, #tpu.memory_space<vmem>>, vector<1x128xf32>
    %44 = vector.broadcast %43 : vector<1x128xf32> to vector<8x128xf32>
    %45 = arith.addf %42, %44 : vector<8x128xf32>
    %c0_41 = arith.constant 0 : index
    %c0_42 = arith.constant 0 : index
    %46 = vector.load %arg8[%c0_41, %c0_42] : memref<8x128xf32, #tpu.memory_space<vmem>>, vector<8x128xf32>
    tpu.vector_store %arg8[%c0_41, %c0_42], %45 {strides = array<i32>} : memref<8x128xf32, #tpu.memory_space<vmem>>, vector<8x128xf32>,
    return
  }
  func.func @transform_1(%arg0: i32, %arg1: memref<64xi32, #tpu.memory_space<smem>>) -> (i32, i32) {
    %c0_i32 = arith.constant 0 : i32
    %c0_i32_0 = arith.constant 0 : i32
    %c0_i32_1 = arith.constant 0 : i32
    return %c0_i32, %c0_i32_0 : i32, i32
  }
  func.func @transform_2(%arg0: i32, %arg1: memref<64xi32, #tpu.memory_space<smem>>) -> (i32, i32) {
    %c0_i32 = arith.constant 0 : i32
    %c0_i32_0 = arith.constant 0 : i32
    %c0_i32_1 = arith.constant 0 : i32
    return %c0_i32, %c0_i32_0 : i32, i32
  }
  func.func @transform_3(%arg0: i32, %arg1: memref<64xi32, #tpu.memory_space<smem>>) -> (i32, i32) {
    %c0_i32 = arith.constant 0 : i32
    %c0_i32_0 = arith.constant 0 : i32
    %c0_i32_1 = arith.constant 0 : i32
    return %c0_i32, %c0_i32_0 : i32, i32
  }
  func.func @transform_4(%arg0: i32, %arg1: memref<64xi32, #tpu.memory_space<smem>>) -> (i32, i32) {
    %c0_i32 = arith.constant 0 : i32
    %c0_i32_0 = arith.constant 0 : i32
    %c0_i32_1 = arith.constant 0 : i32
    return %c0_i32, %c0_i32_0 : i32, i32
  }
  func.func @transform_5(%arg0: i32, %arg1: memref<64xi32, #tpu.memory_space<smem>>) -> (i32, i32) {
    %c0_i32 = arith.constant 0 : i32
    %c0_i32_0 = arith.constant 0 : i32
    %c0_i32_1 = arith.constant 0 : i32
    return %c0_i32, %c0_i32_0 : i32, i32
  }
  func.func @transform_6(%arg0: i32, %arg1: memref<64xi32, #tpu.memory_space<smem>>) -> (i32, i32) {
    %c0_i32 = arith.constant 0 : i32
    %c0_i32_0 = arith.constant 0 : i32
    return %arg0, %c0_i32 : i32, i32
  }
}

</mosaic_0001>

<llo_original>
// kernel: tpu_custom_call.1
$region0: #{tpu_custom_call.1}
  #allocation0 [shape = 'u32[]', space=smem, size = 0x4, offset = 0x4, fixed_abs, tag = 'smem constant byte address 0x4 - core index']
  #allocation1 [shape = 'u32[144,128]{1,0:T(1,128)}', space=vmem, size = 0x12000, scoped, tag = 'internal scratch']
  #allocation2 [shape = 'f32[72,32]{1,0:T(8,128)}', space=vmem, size = 0x9000, scoped, tag = 'scratch operand']
  #allocation3 [shape = 'f32[64,128]{1,0:T(8,128)}', space=vmem, size = 0x8000, scoped, tag = 'scratch operand']
  #allocation4 [shape = 's32[1]{0}', space=sflag, size = 0x4, scoped, tag = 'scratch operand']
  #allocation5 [shape = 's32[1]{0}', space=sflag, size = 0x4, scoped, tag = 'scoped memory for tpu_custom_call.1']
  #allocation6 [shape = 'u8[512]{0}', space=smem, size = 0x200, scoped, tag = 'prefetched SMEM operand 0']
  #allocation14 [shape = 's32[]', space=sflag, size = 0x4, offset = 0, fixed_abs, tag = 'sflag constant byte address 0x0 - dummy sync flag']
  #allocation15 [shape = 's32[]', space=sflag, size = 0x4, offset = 0, fixed_abs, tag = 'sflag constant byte address 0x0 - dummy sync flag']
  #allocation16 [shape = 'u32[]', space=smem, size = 0x4, offset = 0x44, fixed_abs, tag = 'smem constant byte address 0x44 - assertion arg 0']
  #allocation17 [shape = 'u32[]', space=smem, size = 0x4, offset = 0x48, fixed_abs, tag = 'smem constant byte address 0x48 - assertion arg 1']
  %s0 = inlined_call_operand.hbm [shape: s32[64], index: 0, kind: input, shape index: {}]
  %s1 = inlined_call_operand.hbm [shape: f32[32,32], index: 1, kind: input, shape index: {}]
  %s2 = inlined_call_operand.hbm [shape: bf16[128,128], index: 2, kind: input, shape index: {}]
  %s3 = inlined_call_operand.vmem [shape: f32[1,128], index: 3, kind: input, shape index: {}]
  %s4 = inlined_call_operand.hbm [shape: bf16[128,128], index: 4, kind: input, shape index: {}]
  %s5 = inlined_call_operand.vmem [shape: f32[1,128], index: 5, kind: input, shape index: {}]
  %s6 = inlined_call_operand.hbm [shape: f32[64,128], index: 6, kind: input, shape index: {}]
  %s7 = inlined_call_operand.hbm [shape: f32[8,128], index: 7, kind: output, shape index: {}]
  %s8 = sld [smem:[#allocation0]]
  $region60: #{tpu_custom_call.1} parent=0
    _
  %s10 = ssub.s32 1, %s8
  %s11 = scalar_select 0, %s10, %s8
  %13 = dma.hbm_to_smem %s0, 16, [#allocation6], [#allocation5]
  %14 = dma.done [#allocation5], 16
  %15 = sfence
  $region1: #{tpu_custom_call.1} parent=0
    #allocation7 [shape = 'u8[32768]{0}', space=vmem, size = 0x8000, scoped, tag = 'input window, operand 2, single buffered']
    #allocation8 [shape = 's32[1]{0}', space=sflag, size = 0x4, scoped, tag = 'scoped memory for tpu_custom_call.1']
    #allocation9 [shape = 's32[1]{0}', space=sflag, size = 0x4, scoped, tag = 'scoped memory for tpu_custom_call.1']
    #allocation10 [shape = 'u8[32768]{0}', space=vmem, size = 0x8000, scoped, tag = 'input window, operand 4, single buffered']
    #allocation11 [shape = 's32[1]{0}', space=sflag, size = 0x4, scoped, tag = 'scoped memory for tpu_custom_call.1']
    #allocation12 [shape = 'u8[32768]{0}', space=vmem, size = 0x8000, scoped, tag = 'input window, operand 6, single buffered']
    #allocation13 [shape = 'u8[4096]{0}', space=vmem, size = 0x1000, scoped, tag = 'output window, operand 0, single buffered']
    %16 = vsyncpa [#allocation8], 0
    %17 = vsyncpa [#allocation11], 0
    %18 = vsyncpa [#allocation9], 0
    // Predicated region
    $region2: #{tpu_custom_call.1} parent=1 // pred_check
      _
    $region3: #{tpu_custom_call.1} parent=1 // pred_check_branch
      %20 = sbr.rel (0) target = $region5
    $region4: #{tpu_custom_call.1} parent=1 // pred_region
      %s22 = ssub.s32 1024, 1024
      %23 = vsyncadd [#allocation8], %s22
      %s24 = sshll.u32 [#allocation7], 4
      %s25 = int_to_ptr.vmem [resolvable:$true] %s24
      %30 = dma.hbm_to_vmem [thread:$0]  %s2, 1024, %s25, [#allocation8], 64, 64, 4
    $region5: #{tpu_custom_call.1} parent=1 // pred_fallthru
      _
    // Predicated region
    $region6: #{tpu_custom_call.1} parent=1 // pred_check
      _
    $region7: #{tpu_custom_call.1} parent=1 // pred_check_branch
      %32 = sbr.rel (0) target = $region9
    $region8: #{tpu_custom_call.1} parent=1 // pred_region
      _
    $region9: #{tpu_custom_call.1} parent=1 // pred_fallthru
      _
    // Predicated region
    $region10: #{tpu_custom_call.1} parent=1 // pred_check
      _
    $region11: #{tpu_custom_call.1} parent=1 // pred_check_branch
      %34 = sbr.rel (0) target = $region13
    $region12: #{tpu_custom_call.1} parent=1 // pred_region
      %s36 = ssub.s32 1024, 1024
      %37 = vsyncadd [#allocation11], %s36
      %s38 = sshll.u32 [#allocation10], 4
      %s39 = int_to_ptr.vmem [resolvable:$true] %s38
      %44 = dma.hbm_to_vmem [thread:$0]  %s4, 1024, %s39, [#allocation11], 64, 64, 4
    $region13: #{tpu_custom_call.1} parent=1 // pred_fallthru
      _
    // Predicated region
    $region14: #{tpu_custom_call.1} parent=1 // pred_check
      _
    $region15: #{tpu_custom_call.1} parent=1 // pred_check_branch
      %46 = sbr.rel (0) target = $region17
    $region16: #{tpu_custom_call.1} parent=1 // pred_region
      _
    $region17: #{tpu_custom_call.1} parent=1 // pred_fallthru
      _
    // Predicated region
    $region18: #{tpu_custom_call.1} parent=1 // pred_check
      _
    $region19: #{tpu_custom_call.1} parent=1 // pred_check_branch
      %48 = sbr.rel (0) target = $region21
    $region20: #{tpu_custom_call.1} parent=1 // pred_region
      %s50 = ssub.s32 1024, 1024
      %51 = vsyncadd [#allocation11], %s50
      %s52 = sshll.u32 [#allocation12], 4
      %s53 = int_to_ptr.vmem [resolvable:$true] %s52
      %58 = dma.hbm_to_vmem [thread:$0]  %s6, 1024, %s53, [#allocation11], 128, 128, 8
    $region21: #{tpu_custom_call.1} parent=1 // pred_fallthru
      _
    // Predicated region
    $region22: #{tpu_custom_call.1} parent=1 // pred_check
      _
    $region23: #{tpu_custom_call.1} parent=1 // pred_check_branch
      %60 = sbr.rel (0) target = $region25
    $region24: #{tpu_custom_call.1} parent=1 // pred_region
      %61 = dma.done [#allocation8], 1024
    $region25: #{tpu_custom_call.1} parent=1 // pred_fallthru
      _
    // Predicated region
    $region26: #{tpu_custom_call.1} parent=1 // pred_check
      _
    $region27: #{tpu_custom_call.1} parent=1 // pred_check_branch
      %63 = sbr.rel (0) target = $region29
    $region28: #{tpu_custom_call.1} parent=1 // pred_region
      %64 = dma.done [#allocation11], 1024
    $region29: #{tpu_custom_call.1} parent=1 // pred_fallthru
      _
    // Predicated region
    $region30: #{tpu_custom_call.1} parent=1 // pred_check
      _
    $region31: #{tpu_custom_call.1} parent=1 // pred_check_branch
      %66 = sbr.rel (0) target = $region33
    $region32: #{tpu_custom_call.1} parent=1 // pred_region
      %67 = dma.done [#allocation11], 1024
    $region33: #{tpu_custom_call.1} parent=1 // pred_fallthru
      _
    %s69 = smul.u32 0, 64
    loop: start=0, step=1, limit=64
    $region34: #{tpu_custom_call.1} parent=1 // loop_pre_header
      _
    $region35: #{tpu_custom_call.1} parent=1 // loop_header
      %s71 = sphi 0, %s75
      %p72 = scmp.ge.s32.totalorder %s71, 64
    $region36: #{tpu_custom_call.1} parent=1 // loop_header_branch
      %74 = sbr.rel (%p72) target = $region40
    $region37: #{tpu_custom_call.1} parent=1 // loop_body
      %s76 = sadd.s32 %s69, %s71
      %s77 = sld [smem:[#allocation6 + %s76]]
      %s78 = smul.addr %s77, 16
      %s79 = scalar_lea.hbm %s1, %s78
      %s80 = scalar_lea.vmem [#allocation2], %s71
      // Predicated region
      $region41: #{tpu_custom_call.1} parent=37 // pred_check
        _
      $region42: #{tpu_custom_call.1} parent=37 // pred_check_branch
        %82 = sbr.rel target = $region44
      $region43: #{tpu_custom_call.1} parent=37 // pred_region
        %83 = sst [smem:[#allocation16]] [#allocation15]
        %84 = sst [smem:[#allocation17]] [#allocation14]
      $region44: #{tpu_custom_call.1} parent=37 // pred_fallthru
        _
      %86 = shalt.err (0)
      %s88 = sshll.u32 %s80, 4
      %s89 = int_to_ptr.vmem [resolvable:$true] %s88
      %91 = dma.hbm_to_vmem [thread:$0]  %s79, 16, %s89, [#allocation4]
    $region38: #{tpu_custom_call.1} parent=1 // loop_footer
      %s75 = sadd.s32 1, %s71
    $region39: #{tpu_custom_call.1} parent=1 // loop_footer_branch
      %70 = sbr.rel target = $region35
    $region40: #{tpu_custom_call.1} parent=1 // loop_exit
      _
    %vm92 = vcmask 261120
    %93 = vst.msk [vmem:[#allocation2 + $0x40] sm:$0xff] %vm92, 0.0
    loop: start=0, step=1, limit=64
    $region45: #{tpu_custom_call.1} parent=1 // loop_pre_header
      _
    $region46: #{tpu_custom_call.1} parent=1 // loop_header
      %s95 = sphi 0, %s99
      %p96 = scmp.ge.s32.totalorder %s95, 64
    $region47: #{tpu_custom_call.1} parent=1 // loop_header_branch
      %98 = sbr.rel (%p96) target = $region51
    $region48: #{tpu_custom_call.1} parent=1 // loop_body
      %s100 = smul.u32 1, 1
      %s101 = sshll.u32 %s100, 4
      %102 = dma.done [#allocation4], %s101
    $region49: #{tpu_custom_call.1} parent=1 // loop_footer
      %s99 = sadd.s32 1, %s95
    $region50: #{tpu_custom_call.1} parent=1 // loop_footer_branch
      %94 = sbr.rel target = $region46
    $region51: #{tpu_custom_call.1} parent=1 // loop_exit
      _
    %v103 = vld [vmem:[#allocation2] sm:$0xff]
    %v104 = vld [vmem:[#allocation2 + $0x8] sm:$0xff]
    %v105 = vld [vmem:[#allocation2 + $0x10] sm:$0xff]
    %v106 = vld [vmem:[#allocation2 + $0x18] sm:$0xff]
    %v107 = vld [vmem:[#allocation2 + $0x20] sm:$0xff]
    %v108 = vld [vmem:[#allocation2 + $0x28] sm:$0xff]
    %v109 = vld [vmem:[#allocation2 + $0x30] sm:$0xff]
    %v110 = vld [vmem:[#allocation2 + $0x38] sm:$0xff]
    %v111 = vmul.f32 %v103, %v103
    %v112 = vmul.f32 %v104, %v104
    %v113 = vmul.f32 %v105, %v105
    %v114 = vmul.f32 %v106, %v106
    %v115 = vmul.f32 %v107, %v107
    %v116 = vmul.f32 %v108, %v108
    %v117 = vmul.f32 %v109, %v109
    %v118 = vmul.f32 %v110, %v110
    %v119 = vsel %vm92, %v111, 0.0
    %120 = vadd.xlane.f32.xlu0 %v119
    %v121 = vpop.xlane.xlu0 %120
    %v122 = vsel %vm92, %v112, 0.0
    %123 = vadd.xlane.f32.xlu0 %v122
    %v124 = vpop.xlane.xlu0 %123
    %v125 = vsel %vm92, %v113, 0.0
    %126 = vadd.xlane.f32.xlu0 %v125
    %v127 = vpop.xlane.xlu0 %126
    %v128 = vsel %vm92, %v114, 0.0
    %129 = vadd.xlane.f32.xlu0 %v128
    %v130 = vpop.xlane.xlu0 %129
    %v131 = vsel %vm92, %v115, 0.0
    %132 = vadd.xlane.f32.xlu0 %v131
    %v133 = vpop.xlane.xlu0 %132
    %v134 = vsel %vm92, %v116, 0.0
    %135 = vadd.xlane.f32.xlu0 %v134
    %v136 = vpop.xlane.xlu0 %135
    %v137 = vsel %vm92, %v117, 0.0
    %138 = vadd.xlane.f32.xlu0 %v137
    %v139 = vpop.xlane.xlu0 %138
    %v140 = vsel %vm92, %v118, 0.0
    %141 = vadd.xlane.f32.xlu0 %v140
    %v142 = vpop.xlane.xlu0 %141
    %v143 = vadd.f32 %v121, 1e-14
    %v144 = vadd.f32 %v124, 1e-14
    %v145 = vadd.f32 %v127, 1e-14
    %v146 = vadd.f32 %v130, 1e-14
    %v147 = vadd.f32 %v133, 1e-14
    %v148 = vadd.f32 %v136, 1e-14
    %v149 = vadd.f32 %v139, 1e-14
    %v150 = vadd.f32 %v142, 1e-14
    %v151 = vrsqrt.pop %v143
    %v152 = vrsqrt.pop %v144
    %v153 = vrsqrt.pop %v145
    %v154 = vrsqrt.pop %v146
    %v155 = vrsqrt.pop %v147
    %v156 = vrsqrt.pop %v148
    %v157 = vrsqrt.pop %v149
    %v158 = vrsqrt.pop %v150
    %v159 = vmul.f32 %v151, 5.0
    %v160 = vmul.f32 %v152, 5.0
    %v161 = vmul.f32 %v153, 5.0
    %v162 = vmul.f32 %v154, 5.0
    %v163 = vmul.f32 %v155, 5.0
    %v164 = vmul.f32 %v156, 5.0
    %v165 = vmul.f32 %v157, 5.0
    %v166 = vmul.f32 %v158, 5.0
    %v167 = vmin.f32 %v159, 1.0
    %v168 = vmin.f32 %v160, 1.0
    %v169 = vmin.f32 %v161, 1.0
    %v170 = vmin.f32 %v162, 1.0
    %v171 = vmin.f32 %v163, 1.0
    %v172 = vmin.f32 %v164, 1.0
    %v173 = vmin.f32 %v165, 1.0
    %v174 = vmin.f32 %v166, 1.0
    %v175 = vmul.f32 %v103, %v167
    %v176 = vmul.f32 %v104, %v168
    %v177 = vmul.f32 %v105, %v169
    %v178 = vmul.f32 %v106, %v170
    %v179 = vmul.f32 %v107, %v171
    %v180 = vmul.f32 %v108, %v172
    %v181 = vmul.f32 %v109, %v173
    %v182 = vmul.f32 %v110, %v174
    %183 = vst.msk [vmem:[#allocation2] sm:$0xff] %vm92, %v175
    %184 = vst.msk [vmem:[#allocation2 + $0x8] sm:$0xff] %vm92, %v176
    %185 = vst.msk [vmem:[#allocation2 + $0x10] sm:$0xff] %vm92, %v177
    %186 = vst.msk [vmem:[#allocation2 + $0x18] sm:$0xff] %vm92, %v178
    %187 = vst.msk [vmem:[#allocation2 + $0x20] sm:$0xff] %vm92, %v179
    %188 = vst.msk [vmem:[#allocation2 + $0x28] sm:$0xff] %vm92, %v180
    %189 = vst.msk [vmem:[#allocation2 + $0x30] sm:$0xff] %vm92, %v181
    %190 = vst.msk [vmem:[#allocation2 + $0x38] sm:$0xff] %vm92, %v182
    %v191 = vld [vmem:[#allocation2] sm:$0xff]
    %v192 = vld [vmem:[#allocation2 + $0x8] sm:$0xff]
    %v193 = vld [vmem:[#allocation2 + $0x10] sm:$0xff]
    %v194 = vld [vmem:[#allocation2 + $0x18] sm:$0xff]
    %v195 = vld [vmem:[#allocation2 + $0x20] sm:$0xff]
    %v196 = vld [vmem:[#allocation2 + $0x28] sm:$0xff]
    %v197 = vld [vmem:[#allocation2 + $0x30] sm:$0xff]
    %v198 = vld [vmem:[#allocation2 + $0x38] sm:$0xff]
    %199 = vst.msk [vmem:[#allocation3] sm:$0xff] %vm92, %v191
    %200 = vst.msk [vmem:[#allocation3 + $0x8] sm:$0xff] %vm92, %v192
    %201 = vst.msk [vmem:[#allocation3 + $0x10] sm:$0xff] %vm92, %v193
    %202 = vst.msk [vmem:[#allocation3 + $0x18] sm:$0xff] %vm92, %v194
    %203 = vst.msk [vmem:[#allocation3 + $0x20] sm:$0xff] %vm92, %v195
    %204 = vst.msk [vmem:[#allocation3 + $0x28] sm:$0xff] %vm92, %v196
    %205 = vst.msk [vmem:[#allocation3 + $0x30] sm:$0xff] %vm92, %v197
    %206 = vst.msk [vmem:[#allocation3 + $0x38] sm:$0xff] %vm92, %v198
    %v207 = vld [vmem:[#allocation2 + $0x1] sm:$0xff]
    %v208 = vld [vmem:[#allocation2 + $0x9] sm:$0xff]
    %v209 = vld [vmem:[#allocation2 + $0x11] sm:$0xff]
    %v210 = vld [vmem:[#allocation2 + $0x19] sm:$0xff]
    %v211 = vld [vmem:[#allocation2 + $0x21] sm:$0xff]
    %v212 = vld [vmem:[#allocation2 + $0x29] sm:$0xff]
    %v213 = vld [vmem:[#allocation2 + $0x31] sm:$0xff]
    %v214 = vld [vmem:[#allocation2 + $0x39] sm:$0xff]
    %223 = vrot.lane.b32.xlu0 %v207, 32
    %v224 = vpop.permute.xlu0 %223
    %225 = vrot.lane.b32.xlu0 %v208, 32
    %v226 = vpop.permute.xlu0 %225
    %227 = vrot.lane.b32.xlu0 %v209, 32
    %v228 = vpop.permute.xlu0 %227
    %229 = vrot.lane.b32.xlu0 %v210, 32
    %v230 = vpop.permute.xlu0 %229
    %231 = vrot.lane.b32.xlu0 %v211, 32
    %v232 = vpop.permute.xlu0 %231
    %233 = vrot.lane.b32.xlu0 %v212, 32
    %v234 = vpop.permute.xlu0 %233
    %235 = vrot.lane.b32.xlu0 %v213, 32
    %v236 = vpop.permute.xlu0 %235
    %237 = vrot.lane.b32.xlu0 %v214, 32
    %v238 = vpop.permute.xlu0 %237
    %vm247 = vcmask 523520
    %248 = vst.msk [vmem:[#allocation3] sm:$0xff] %vm247, %v224
    %249 = vst.msk [vmem:[#allocation3 + $0x8] sm:$0xff] %vm247, %v226
    %250 = vst.msk [vmem:[#allocation3 + $0x10] sm:$0xff] %vm247, %v228
    %251 = vst.msk [vmem:[#allocation3 + $0x18] sm:$0xff] %vm247, %v230
    %252 = vst.msk [vmem:[#allocation3 + $0x20] sm:$0xff] %vm247, %v232
    %253 = vst.msk [vmem:[#allocation3 + $0x28] sm:$0xff] %vm247, %v234
    %254 = vst.msk [vmem:[#allocation3 + $0x30] sm:$0xff] %vm247, %v236
    %255 = vst.msk [vmem:[#allocation3 + $0x38] sm:$0xff] %vm247, %v238
    %v256 = vld [vmem:[#allocation2 + $0x2] sm:$0xff]
    %v257 = vld [vmem:[#allocation2 + $0xa] sm:$0xff]
    %v258 = vld [vmem:[#allocation2 + $0x12] sm:$0xff]
    %v259 = vld [vmem:[#allocation2 + $0x1a] sm:$0xff]
    %v260 = vld [vmem:[#allocation2 + $0x22] sm:$0xff]
    %v261 = vld [vmem:[#allocation2 + $0x2a] sm:$0xff]
    %v262 = vld [vmem:[#allocation2 + $0x32] sm:$0xff]
    %v263 = vld [vmem:[#allocation2 + $0x3a] sm:$0xff]
    %272 = vrot.lane.b32.xlu0 %v256, 64
    %v273 = vpop.permute.xlu0 %272
    %274 = vrot.lane.b32.xlu0 %v257, 64
    %v275 = vpop.permute.xlu0 %274
    %276 = vrot.lane.b32.xlu0 %v258, 64
    %v277 = vpop.permute.xlu0 %276
    %278 = vrot.lane.b32.xlu0 %v259, 64
    %v279 = vpop.permute.xlu0 %278
    %280 = vrot.lane.b32.xlu0 %v260, 64
    %v281 = vpop.permute.xlu0 %280
    %282 = vrot.lane.b32.xlu0 %v261, 64
    %v283 = vpop.permute.xlu0 %282
    %284 = vrot.lane.b32.xlu0 %v262, 64
    %v285 = vpop.permute.xlu0 %284
    %286 = vrot.lane.b32.xlu0 %v263, 64
    %v287 = vpop.permute.xlu0 %286
    %vm296 = vcmask 785920
    %297 = vst.msk [vmem:[#allocation3] sm:$0xff] %vm296, %v273
    %298 = vst.msk [vmem:[#allocation3 + $0x8] sm:$0xff] %vm296, %v275
    %299 = vst.msk [vmem:[#allocation3 + $0x10] sm:$0xff] %vm296, %v277
    %300 = vst.msk [vmem:[#allocation3 + $0x18] sm:$0xff] %vm296, %v279
    %301 = vst.msk [vmem:[#allocation3 + $0x20] sm:$0xff] %vm296, %v281
    %302 = vst.msk [vmem:[#allocation3 + $0x28] sm:$0xff] %vm296, %v283
    %303 = vst.msk [vmem:[#allocation3 + $0x30] sm:$0xff] %vm296, %v285
    %304 = vst.msk [vmem:[#allocation3 + $0x38] sm:$0xff] %vm296, %v287
    %v305 = vld [vmem:[#allocation2 + $0x3] sm:$0xff]
    %v306 = vld [vmem:[#allocation2 + $0xb] sm:$0xff]
    %v307 = vld [vmem:[#allocation2 + $0x13] sm:$0xff]
    %v308 = vld [vmem:[#allocation2 + $0x1b] sm:$0xff]
    %v309 = vld [vmem:[#allocation2 + $0x23] sm:$0xff]
    %v310 = vld [vmem:[#allocation2 + $0x2b] sm:$0xff]
    %v311 = vld [vmem:[#allocation2 + $0x33] sm:$0xff]
    %v312 = vld [vmem:[#allocation2 + $0x3b] sm:$0xff]
    %321 = vrot.lane.b32.xlu0 %v305, 96
    %v322 = vpop.permute.xlu0 %321
    %323 = vrot.lane.b32.xlu0 %v306, 96
    %v324 = vpop.permute.xlu0 %323
    %325 = vrot.lane.b32.xlu0 %v307, 96
    %v326 = vpop.permute.xlu0 %325
    %327 = vrot.lane.b32.xlu0 %v308, 96
    %v328 = vpop.permute.xlu0 %327
    %329 = vrot.lane.b32.xlu0 %v309, 96
    %v330 = vpop.permute.xlu0 %329
    %331 = vrot.lane.b32.xlu0 %v310, 96
    %v332 = vpop.permute.xlu0 %331
    %333 = vrot.lane.b32.xlu0 %v311, 96
    %v334 = vpop.permute.xlu0 %333
    %335 = vrot.lane.b32.xlu0 %v312, 96
    %v336 = vpop.permute.xlu0 %335
    %vm345 = vcmask 1048320
    %346 = vst.msk [vmem:[#allocation3] sm:$0xff] %vm345, %v322
    %347 = vst.msk [vmem:[#allocation3 + $0x8] sm:$0xff] %vm345, %v324
    %348 = vst.msk [vmem:[#allocation3 + $0x10] sm:$0xff] %vm345, %v326
    %349 = vst.msk [vmem:[#allocation3 + $0x18] sm:$0xff] %vm345, %v328
    %350 = vst.msk [vmem:[#allocation3 + $0x20] sm:$0xff] %vm345, %v330
    %351 = vst.msk [vmem:[#allocation3 + $0x28] sm:$0xff] %vm345, %v332
    %352 = vst.msk [vmem:[#allocation3 + $0x30] sm:$0xff] %vm345, %v334
    %353 = vst.msk [vmem:[#allocation3 + $0x38] sm:$0xff] %vm345, %v336
    %v354 = vld [vmem:[#allocation3] sm:$0xff]
    %v355 = vld [vmem:[#allocation3 + $0x8] sm:$0xff]
    %v356 = vld [vmem:[#allocation3 + $0x10] sm:$0xff]
    %v357 = vld [vmem:[#allocation3 + $0x18] sm:$0xff]
    %v358 = vld [vmem:[#allocation3 + $0x20] sm:$0xff]
    %v359 = vld [vmem:[#allocation3 + $0x28] sm:$0xff]
    %v360 = vld [vmem:[#allocation3 + $0x30] sm:$0xff]
    %v361 = vld [vmem:[#allocation3 + $0x38] sm:$0xff]
    %v362 = vpack.c.bf16 %v355, %v354
    %v363 = vpack.c.bf16 %v357, %v356
    %v364 = vpack.c.bf16 %v359, %v358
    %v365 = vpack.c.bf16 %v361, %v360
    %v366 = vld [vmem:[#allocation7] sm:$0xf]
    %v367 = vld [vmem:[#allocation7 + $0x4] sm:$0xf]
    %v368 = vld [vmem:[#allocation7 + $0x8] sm:$0xf]
    %v369 = vld [vmem:[#allocation7 + $0xc] sm:$0xf]
    %v370 = vld [vmem:[#allocation7 + $0x10] sm:$0xf]
    %v371 = vld [vmem:[#allocation7 + $0x14] sm:$0xf]
    %v372 = vld [vmem:[#allocation7 + $0x18] sm:$0xf]
    %v373 = vld [vmem:[#allocation7 + $0x1c] sm:$0xf]
    %v374 = vld [vmem:[#allocation7 + $0x20] sm:$0xf]
    %v375 = vld [vmem:[#allocation7 + $0x24] sm:$0xf]
    %v376 = vld [vmem:[#allocation7 + $0x28] sm:$0xf]
    %v377 = vld [vmem:[#allocation7 + $0x2c] sm:$0xf]
    %v378 = vld [vmem:[#allocation7 + $0x30] sm:$0xf]
    %v379 = vld [vmem:[#allocation7 + $0x34] sm:$0xf]
    %v380 = vld [vmem:[#allocation7 + $0x38] sm:$0xf]
    %v381 = vld [vmem:[#allocation7 + $0x3c] sm:$0xf]
    %v382 = vld [vmem:[%s3] sm:$0x1]
    %v384 = vlaneseq
    %v385 = vshrl.u32 %v384, 7
    %v386 = vsub.s32 0, %v385
    %v387 = vrot.slane %v382, %v386
    %v405 = vunpack.c.l.b16 %v366
    %v406 = vunpack.c.l.b16 %v367
    %v407 = vunpack.c.l.b16 %v368
    %v408 = vunpack.c.l.b16 %v369
    %v409 = vunpack.c.l.b16 %v370
    %v410 = vunpack.c.l.b16 %v371
    %v411 = vunpack.c.l.b16 %v372
    %v412 = vunpack.c.l.b16 %v373
    %v413 = vunpack.c.l.b16 %v374
    %v414 = vunpack.c.l.b16 %v375
    %v415 = vunpack.c.l.b16 %v376
    %v416 = vunpack.c.l.b16 %v377
    %v417 = vunpack.c.l.b16 %v378
    %v418 = vunpack.c.l.b16 %v379
    %v419 = vunpack.c.l.b16 %v380
    %v420 = vunpack.c.l.b16 %v381
    %v421 = vpack.c.b16 %v406, %v405
    %v422 = vpack.c.b16 %v408, %v407
    %v423 = vpack.c.b16 %v410, %v409
    %v424 = vpack.c.b16 %v412, %v411
    %v425 = vpack.c.b16 %v414, %v413
    %v426 = vpack.c.b16 %v416, %v415
    %v427 = vpack.c.b16 %v418, %v417
    %v428 = vpack.c.b16 %v420, %v419
    %437 = vmatprep.subr.bf16.mxu0 0
    %438 = vmatpush1.bf16.msra.mxu0 %v421
    %439 = vmatprep.subr.bf16.mxu0 0
    %440 = vmatpush1.bf16.msra.mxu0 %v422
    %441 = vmatprep.subr.bf16.mxu0 0
    %442 = vmatpush1.bf16.msra.mxu0 %v423
    %443 = vmatprep.subr.bf16.mxu0 0
    %444 = vmatpush1.bf16.msra.mxu0 %v424
    %445 = vmatprep.subr.bf16.mxu0 0
    %446 = vmatpush1.bf16.msra.mxu0 %v425
    %447 = vmatprep.subr.bf16.mxu0 0
    %448 = vmatpush1.bf16.msra.mxu0 %v426
    %449 = vmatprep.subr.bf16.mxu0 0
    %450 = vmatpush1.bf16.msra.mxu0 %v427
    %451 = vmatprep.subr.bf16.mxu0 0
    %452 = vmatpush1.bf16.msra.mxu0 %v428
    %453 = vmatprep.subr.bf16.mxu0 0
    %454 = vmatpush1.bf16.msra.mxu0 0
    %455 = vmatprep.subr.bf16.mxu0 0
    %456 = vmatpush1.bf16.msra.mxu0 0
    %457 = vmatprep.subr.bf16.mxu0 0
    %458 = vmatpush1.bf16.msra.mxu0 0
    %459 = vmatprep.subr.bf16.mxu0 0
    %460 = vmatpush1.bf16.msra.mxu0 0
    %461 = vmatprep.subr.bf16.mxu0 0
    %462 = vmatpush1.bf16.msra.mxu0 0
    %463 = vmatprep.subr.bf16.mxu0 0
    %464 = vmatpush1.bf16.msra.mxu0 0
    %465 = vmatprep.subr.bf16.mxu0 0
    %466 = vmatpush1.bf16.msra.mxu0 0
    %467 = vmatprep.subr.bf16.mxu0 0
    %468 = vmatpush1.bf16.msra.mxu0 0
    %469 = vmatprep.mubr.bf16.mxu0 0
    %470 = vmatmul.mubr.bf16.gmra.mrb[0].mxu0 %v362
    %v471 = vpop.f32.mrb[0].mxu0
    %v472 = vadd.f32 %v387, %v471
    %v473 = vpop.f32.mrb[0].mxu0
    %v474 = vpop.f32.mrb[0].mxu0
    %v475 = vadd.f32 %v387, %v474
    %v476 = vpop.f32.mrb[0].mxu0
    %477 = vmatprep.mubr.bf16.mxu0 0
    %478 = vmatmul.mubr.bf16.gmra.mrb[0].mxu0 %v363
    %v479 = vpop.f32.mrb[0].mxu0
    %v480 = vadd.f32 %v387, %v479
    %v481 = vpop.f32.mrb[0].mxu0
    %v482 = vpop.f32.mrb[0].mxu0
    %v483 = vadd.f32 %v387, %v482
    %v484 = vpop.f32.mrb[0].mxu0
    %485 = vmatprep.mubr.bf16.mxu0 0
    %486 = vmatmul.mubr.bf16.gmra.mrb[0].mxu0 %v364
    %v487 = vpop.f32.mrb[0].mxu0
    %v488 = vadd.f32 %v387, %v487
    %v489 = vpop.f32.mrb[0].mxu0
    %v490 = vpop.f32.mrb[0].mxu0
    %v491 = vadd.f32 %v387, %v490
    %v492 = vpop.f32.mrb[0].mxu0
    %493 = vmatprep.mubr.bf16.mxu0 0
    %494 = vmatmul.mubr.bf16.gmra.mrb[0].mxu0 %v365
    %v495 = vpop.f32.mrb[0].mxu0
    %v496 = vadd.f32 %v387, %v495
    %v497 = vpop.f32.mrb[0].mxu0
    %v498 = vpop.f32.mrb[0].mxu0
    %v499 = vadd.f32 %v387, %v498
    %v500 = vpop.f32.mrb[0].mxu0
    %501 = vdwg.mxu0
    %v502 = vmax.f32 %v472, 0.0
    %v503 = vmax.f32 %v475, 0.0
    %v504 = vmax.f32 %v480, 0.0
    %v505 = vmax.f32 %v483, 0.0
    %v506 = vmax.f32 %v488, 0.0
    %v507 = vmax.f32 %v491, 0.0
    %v508 = vmax.f32 %v496, 0.0
    %v509 = vmax.f32 %v499, 0.0
    %v510 = vld [vmem:[#allocation12] sm:$0xff]
    %v511 = vld [vmem:[#allocation12 + $0x8] sm:$0xff]
    %v512 = vld [vmem:[#allocation12 + $0x10] sm:$0xff]
    %v513 = vld [vmem:[#allocation12 + $0x18] sm:$0xff]
    %v514 = vld [vmem:[#allocation12 + $0x20] sm:$0xff]
    %v515 = vld [vmem:[#allocation12 + $0x28] sm:$0xff]
    %v516 = vld [vmem:[#allocation12 + $0x30] sm:$0xff]
    %v517 = vld [vmem:[#allocation12 + $0x38] sm:$0xff]
    %v518 = vadd.f32 %v502, %v510
    %v519 = vadd.f32 %v503, %v511
    %v520 = vadd.f32 %v504, %v512
    %v521 = vadd.f32 %v505, %v513
    %v522 = vadd.f32 %v506, %v514
    %v523 = vadd.f32 %v507, %v515
    %v524 = vadd.f32 %v508, %v516
    %v525 = vadd.f32 %v509, %v517
    %v526 = vrot.slane %v518, 4
    %v527 = vmax.f32 %v518, %v526
    %v528 = vrot.slane %v527, 2
    %v529 = vmax.f32 %v527, %v528
    %v530 = vrot.slane %v529, 1
    %v531 = vmax.f32 %v529, %v530
    %v532 = vrot.slane %v519, 4
    %v533 = vmax.f32 %v519, %v532
    %v534 = vrot.slane %v533, 2
    %v535 = vmax.f32 %v533, %v534
    %v536 = vrot.slane %v535, 1
    %v537 = vmax.f32 %v535, %v536
    %v538 = vrot.slane %v520, 4
    %v539 = vmax.f32 %v520, %v538
    %v540 = vrot.slane %v539, 2
    %v541 = vmax.f32 %v539, %v540
    %v542 = vrot.slane %v541, 1
    %v543 = vmax.f32 %v541, %v542
    %v544 = vrot.slane %v521, 4
    %v545 = vmax.f32 %v521, %v544
    %v546 = vrot.slane %v545, 2
    %v547 = vmax.f32 %v545, %v546
    %v548 = vrot.slane %v547, 1
    %v549 = vmax.f32 %v547, %v548
    %v550 = vrot.slane %v522, 4
    %v551 = vmax.f32 %v522, %v550
    %v552 = vrot.slane %v551, 2
    %v553 = vmax.f32 %v551, %v552
    %v554 = vrot.slane %v553, 1
    %v555 = vmax.f32 %v553, %v554
    %v556 = vrot.slane %v523, 4
    %v557 = vmax.f32 %v523, %v556
    %v558 = vrot.slane %v557, 2
    %v559 = vmax.f32 %v557, %v558
    %v560 = vrot.slane %v559, 1
    %v561 = vmax.f32 %v559, %v560
    %v562 = vrot.slane %v524, 4
    %v563 = vmax.f32 %v524, %v562
    %v564 = vrot.slane %v563, 2
    %v565 = vmax.f32 %v563, %v564
    %v566 = vrot.slane %v565, 1
    %v567 = vmax.f32 %v565, %v566
    %v568 = vrot.slane %v525, 4
    %v569 = vmax.f32 %v525, %v568
    %v570 = vrot.slane %v569, 2
    %v571 = vmax.f32 %v569, %v570
    %v572 = vrot.slane %v571, 1
    %v573 = vmax.f32 %v571, %v572
    %v574 = vpack.c.bf16 %v531, %v531
    %v575 = vpack.c.bf16 %v537, %v537
    %v576 = vpack.c.bf16 %v543, %v543
    %v577 = vpack.c.bf16 %v549, %v549
    %v578 = vpack.c.bf16 %v555, %v555
    %v579 = vpack.c.bf16 %v561, %v561
    %v580 = vpack.c.bf16 %v567, %v567
    %v581 = vpack.c.bf16 %v573, %v573
    %v582 = vld [vmem:[#allocation10] sm:$0xf]
    %v583 = vld [vmem:[#allocation10 + $0x4] sm:$0xf]
    %v584 = vld [vmem:[#allocation10 + $0x8] sm:$0xf]
    %v585 = vld [vmem:[#allocation10 + $0xc] sm:$0xf]
    %v586 = vld [vmem:[#allocation10 + $0x10] sm:$0xf]
    %v587 = vld [vmem:[#allocation10 + $0x14] sm:$0xf]
    %v588 = vld [vmem:[#allocation10 + $0x18] sm:$0xf]
    %v589 = vld [vmem:[#allocation10 + $0x1c] sm:$0xf]
    %v590 = vld [vmem:[#allocation10 + $0x20] sm:$0xf]
    %v591 = vld [vmem:[#allocation10 + $0x24] sm:$0xf]
    %v592 = vld [vmem:[#allocation10 + $0x28] sm:$0xf]
    %v593 = vld [vmem:[#allocation10 + $0x2c] sm:$0xf]
    %v594 = vld [vmem:[#allocation10 + $0x30] sm:$0xf]
    %v595 = vld [vmem:[#allocation10 + $0x34] sm:$0xf]
    %v596 = vld [vmem:[#allocation10 + $0x38] sm:$0xf]
    %v597 = vld [vmem:[#allocation10 + $0x3c] sm:$0xf]
    %v598 = vld [vmem:[%s5] sm:$0x1]
    %v600 = vlaneseq
    %v601 = vshrl.u32 %v600, 7
    %v602 = vsub.s32 0, %v601
    %v603 = vrot.slane %v598, %v602
    %v613 = vunpack.c.l.b16 %v574
    %v614 = vunpack.c.l.b16 %v575
    %v615 = vunpack.c.l.b16 %v576
    %v616 = vunpack.c.l.b16 %v577
    %v617 = vunpack.c.l.b16 %v578
    %v618 = vunpack.c.l.b16 %v579
    %v619 = vunpack.c.l.b16 %v580
    %v620 = vunpack.c.l.b16 %v581
    %vm621 = vcmask 1041409
    %v622 = vsel %vm621, %v614, %v613
    %vm623 = vcmask 1042434
    %v624 = vsel %vm623, %v615, %v622
    %vm625 = vcmask 1043459
    %v626 = vsel %vm625, %v616, %v624
    %vm627 = vcmask 1044484
    %v628 = vsel %vm627, %v617, %v626
    %vm629 = vcmask 1045509
    %v630 = vsel %vm629, %v618, %v628
    %vm631 = vcmask 1046534
    %v632 = vsel %vm631, %v619, %v630
    %vm633 = vcmask 1047559
    %v634 = vsel %vm633, %v620, %v632
    %v635 = vpack.c.b16 %v634, %v634
    %v653 = vunpack.c.l.b16 %v582
    %v654 = vunpack.c.l.b16 %v583
    %v655 = vunpack.c.l.b16 %v584
    %v656 = vunpack.c.l.b16 %v585
    %v657 = vunpack.c.l.b16 %v586
    %v658 = vunpack.c.l.b16 %v587
    %v659 = vunpack.c.l.b16 %v588
    %v660 = vunpack.c.l.b16 %v589
    %v661 = vunpack.c.l.b16 %v590
    %v662 = vunpack.c.l.b16 %v591
    %v663 = vunpack.c.l.b16 %v592
    %v664 = vunpack.c.l.b16 %v593
    %v665 = vunpack.c.l.b16 %v594
    %v666 = vunpack.c.l.b16 %v595
    %v667 = vunpack.c.l.b16 %v596
    %v668 = vunpack.c.l.b16 %v597
    %v669 = vpack.c.b16 %v654, %v653
    %v670 = vpack.c.b16 %v656, %v655
    %v671 = vpack.c.b16 %v658, %v657
    %v672 = vpack.c.b16 %v660, %v659
    %v673 = vpack.c.b16 %v662, %v661
    %v674 = vpack.c.b16 %v664, %v663
    %v675 = vpack.c.b16 %v666, %v665
    %v676 = vpack.c.b16 %v668, %v667
    %685 = vmatprep.subr.bf16.mxu0 0
    %686 = vmatpush1.bf16.msra.mxu0 %v669
    %687 = vmatprep.subr.bf16.mxu0 0
    %688 = vmatpush1.bf16.msra.mxu0 %v670
    %689 = vmatprep.subr.bf16.mxu0 0
    %690 = vmatpush1.bf16.msra.mxu0 %v671
    %691 = vmatprep.subr.bf16.mxu0 0
    %692 = vmatpush1.bf16.msra.mxu0 %v672
    %693 = vmatprep.subr.bf16.mxu0 0
    %694 = vmatpush1.bf16.msra.mxu0 %v673
    %695 = vmatprep.subr.bf16.mxu0 0
    %696 = vmatpush1.bf16.msra.mxu0 %v674
    %697 = vmatprep.subr.bf16.mxu0 0
    %698 = vmatpush1.bf16.msra.mxu0 %v675
    %699 = vmatprep.subr.bf16.mxu0 0
    %700 = vmatpush1.bf16.msra.mxu0 %v676
    %701 = vmatprep.subr.bf16.mxu0 0
    %702 = vmatpush1.bf16.msra.mxu0 0
    %703 = vmatprep.subr.bf16.mxu0 0
    %704 = vmatpush1.bf16.msra.mxu0 0
    %705 = vmatprep.subr.bf16.mxu0 0
    %706 = vmatpush1.bf16.msra.mxu0 0
    %707 = vmatprep.subr.bf16.mxu0 0
    %708 = vmatpush1.bf16.msra.mxu0 0
    %709 = vmatprep.subr.bf16.mxu0 0
    %710 = vmatpush1.bf16.msra.mxu0 0
    %711 = vmatprep.subr.bf16.mxu0 0
    %712 = vmatpush1.bf16.msra.mxu0 0
    %713 = vmatprep.subr.bf16.mxu0 0
    %714 = vmatpush1.bf16.msra.mxu0 0
    %715 = vmatprep.subr.bf16.mxu0 0
    %716 = vmatpush1.bf16.msra.mxu0 0
    %717 = vmatprep.mubr.bf16.mxu0 0
    %718 = vmatmul.mubr.bf16.gmra.mrb[0].mxu0 %v635
    %v719 = vpop.f32.mrb[0].mxu0
    %v720 = vadd.f32 %v603, %v719
    %v721 = vpop.f32.mrb[0].mxu0
    %v722 = vpop.f32.mrb[0].mxu0
    %v723 = vpop.f32.mrb[0].mxu0
    %724 = vdwg.mxu0
    %725 = vst [vmem:[#allocation13] sm:$0xff] %v720
    // Predicated region
    $region52: #{tpu_custom_call.1} parent=1 // pred_check
      _
    $region53: #{tpu_custom_call.1} parent=1 // pred_check_branch
      %727 = sbr.rel (0) target = $region55
    $region54: #{tpu_custom_call.1} parent=1 // pred_region
      %s729 = ssub.s32 128, 128
      %730 = vsyncadd [#allocation9], %s729
      %s732 = sshll.u32 [#allocation13], 4
      %s733 = int_to_ptr.vmem [resolvable:$true] %s732
      %735 = dma.vmem_to_hbm [thread:$0]  %s733, 128, %s7, [#allocation9]
    $region55: #{tpu_custom_call.1} parent=1 // pred_fallthru
      _
    // Predicated region
    $region56: #{tpu_custom_call.1} parent=1 // pred_check
      _
    $region57: #{tpu_custom_call.1} parent=1 // pred_check_branch
      %737 = sbr.rel (0) target = $region59
    $region58: #{tpu_custom_call.1} parent=1 // pred_region
      %738 = dma.done [#allocation9], 128
    $region59: #{tpu_custom_call.1} parent=1 // pred_fallthru
      _
    %739 = vsyncpa [#allocation8], 1
    %740 = vsyncpa [#allocation11], 1
    %741 = vsyncpa [#allocation9], 1
  %742 = vsyncmov [#allocation4]
  %s743 = vpop.sfrf %742
  %p744 = scmp.eq.s32.totalorder %s743, 0
  %p745 = pneg %p744
  %747 = shalt.err (%p745)

</llo_original>
